<compile_context>
chip_gen: v6e
topology: v6e:2x2x1
jax: 0.10.0
libtpu: 0.0.40
codegen_flags: <defaults>
</compile_context>

<pallas_src>
import jax
import jax.numpy as jnp
from jax.experimental import pallas as pl
from jax.experimental.pallas import tpu as pltpu


def argmax_decode_kernel(x_ref, tags_ref):
    """x_ref: (1, rows_tile, T) logits. tags_ref: (1, rows_tile) int32 argmax."""
    x = x_ref[...]                                              # (1, R_t, T)
    num_tags = x.shape[-1]
    row_max = jnp.max(x, axis=-1, keepdims=True)                # (1, R_t, 1)
    idx = jax.lax.broadcasted_iota(jnp.int32, x.shape, dimension=2)
    # first-occurrence argmax (matches torch.max semantics)
    best = jnp.min(jnp.where(x == row_max, idx, num_tags), axis=-1)  # (1, R_t)
    tags_ref[...] = best.astype(jnp.int32)


def _pick_rows_tile(num_rows, num_tags, itemsize):
    """Largest multiple-of-128 row tile (<=1024) that keeps the double-buffered
    input stream comfortably inside the scoped VMEM default on all chips."""
    budget_bytes = 8 * 1024 * 1024
    rows_tile = 1024
    while rows_tile > 128 and 2 * rows_tile * num_tags * itemsize > budget_bytes:
        rows_tile //= 2
    padded_rows = ((num_rows + 127) // 128) * 128
    return min(rows_tile, max(128, padded_rows))


def softmax_decode_device(lstm_out, mask):
    """Device part of SoftmaxLayer.forward.

    lstm_out: (B, S, T) float (f32 or bf16)
    mask:     (B, S)    int/bool (1 = valid token)
    Returns (tags (B, S) int32, lens (B,) int32) device arrays.
    """
    B, S, T = lstm_out.shape
    R = B * S
    rows_tile = _pick_rows_tile(R, T, jnp.dtype(lstm_out.dtype).itemsize)
    num_tiles = pl.cdiv(R, rows_tile)
    R_pad = num_tiles * rows_tile

    x = lstm_out.reshape(R, T)
    if R_pad != R:
        x = jnp.pad(x, ((0, R_pad - R), (0, 0)))
    x = x.reshape(num_tiles, rows_tile, T)

    tags_tiles = pl.pallas_call(
        argmax_decode_kernel,
        out_shape=jax.ShapeDtypeStruct((num_tiles, rows_tile), jnp.int32),
        grid_spec=pltpu.PrefetchScalarGridSpec(
            num_scalar_prefetch=0,
            grid=(num_tiles,),
            in_specs=[pl.BlockSpec((1, rows_tile, T), lambda i: (i, 0, 0))],
            out_specs=pl.BlockSpec((1, rows_tile), lambda i: (i, 0)),
        ),
        compiler_params=pltpu.CompilerParams(
            dimension_semantics=("parallel",)),
    )(x)

    tags = tags_tiles.reshape(R_pad)[:R].reshape(B, S)
    lens = jnp.sum(mask.astype(jnp.int32), axis=-1)  # trivial reduction: plain XLA
    return tags, lens


def softmax_layer_forward(lstm_out, mask):
    """Pallas-backed equivalent of SoftmaxLayer.forward: returns a list of
    per-sequence best-tag paths (Python lists), like the torch module."""
    tags, lens = jax.block_until_ready(softmax_decode_device(lstm_out, mask))
    tags_h, lens_h = jax.device_get((tags, lens))
    # Ragged path assembly is inherently host-side (same as the torch forward).
    return [tags_h[i, : int(lens_h[i])].tolist() for i in range(tags_h.shape[0])]


if __name__ == "__main__":
    key = jax.random.PRNGKey(0)
    B, S, T = 2, 8, 32  # batch, seq_len, num_tags
    k1, _ = jax.random.split(key)
    lstm_out = jax.random.normal(k1, (B, S, T), dtype=jnp.float32)
    # deterministic ragged mask: first row length 5, second row length 8
    seq_lens = jnp.array([5, 8], dtype=jnp.int32)
    mask = (jnp.arange(S)[None, :] < seq_lens[:, None]).astype(jnp.int32)

    best_paths = softmax_layer_forward(lstm_out, mask)

    # reference check in plain JAX (argmax over log_softmax == argmax over logits)
    ref_scores = jax.nn.log_softmax(lstm_out, axis=-1)
    ref_tags = jnp.argmax(ref_scores, axis=-1)
    ref_paths = [ref_tags[i, : int(seq_lens[i])].tolist() for i in range(B)]
    assert best_paths == ref_paths, (best_paths, ref_paths)
    assert len(best_paths[0]) == 5 and len(best_paths[1]) == 8

    print("KERNEL_OK")
</pallas_src>

<mosaic_0001>
module attributes {stable_mosaic.version = 11 : i64} {
  func.func @argmax_decode_kernel(%arg0: i32, %arg1: memref<1x128x32xf32, #tpu.memory_space<vmem>>, %arg2: memref<1x128xi32, #tpu.memory_space<vmem>>) attributes {dimension_semantics = [#tpu.dimension_semantics<parallel>], iteration_bounds = array<i64: 1>, scalar_prefetch = 0 : i64, scratch_operands = 0 : i64, tpu.core_type = #tpu.core_type<tc>, window_params = [{transform_indices = @transform_0, window_bounds = array<i64: 1, 128, 32>}, {transform_indices = @transform_1, window_bounds = array<i64: 1, 128>}]} {
    %c0 = arith.constant 0 : index
    %c0_0 = arith.constant 0 : index
    %c0_1 = arith.constant 0 : index
    %0 = vector.load %arg1[%c0, %c0_0, %c0_1] : memref<1x128x32xf32, #tpu.memory_space<vmem>>, vector<1x128x32xf32>
    %cst = arith.constant dense<0xFF800000> : vector<1x128xf32>
    %1 = vector.multi_reduction <maximumf>, %0, %cst [2] : vector<1x128x32xf32> to vector<1x128xf32>
    %2 = vector.shape_cast %1 : vector<1x128xf32> to vector<1x128x1xf32>
    %3 = tpu.iota {dimensions = array<i32: 2>} : vector<1x128x32xi32>
    %4 = vector.broadcast %2 : vector<1x128x1xf32> to vector<1x128x32xf32>
    %5 = arith.cmpf oeq, %0, %4 : vector<1x128x32xf32>
    %c32_i32 = arith.constant 32 : i32
    %6 = vector.broadcast %c32_i32 : i32 to vector<1x128x32xi32>
    %7 = arith.select %5, %3, %6 : vector<1x128x32xi1>, vector<1x128x32xi32>
    %cst_2 = arith.constant dense<2147483647> : vector<1x128xi32>
    %8 = vector.multi_reduction <minsi>, %7, %cst_2 [2] : vector<1x128x32xi32> to vector<1x128xi32>
    %c0_3 = arith.constant 0 : index
    %c0_4 = arith.constant 0 : index
    %9 = vector.load %arg2[%c0_3, %c0_4] : memref<1x128xi32, #tpu.memory_space<vmem>>, vector<1x128xi32>
    tpu.vector_store %arg2[%c0_3, %c0_4], %8 {strides = array<i32>} : memref<1x128xi32, #tpu.memory_space<vmem>>, vector<1x128xi32>,
    return
  }
  func.func @transform_0(%arg0: i32) -> (i32, i32, i32) {
    %c0_i32 = arith.constant 0 : i32
    %c0_i32_0 = arith.constant 0 : i32
    %c0_i32_1 = arith.constant 0 : i32
    return %arg0, %c0_i32, %c0_i32_0 : i32, i32, i32
  }
  func.func @transform_1(%arg0: i32) -> (i32, i32) {
    %c0_i32 = arith.constant 0 : i32
    %c0_i32_0 = arith.constant 0 : i32
    return %arg0, %c0_i32 : i32, i32
  }
}

</mosaic_0001>

<llo_original>
// kernel: tpu_custom_call.1
$region0: #{tpu_custom_call.1}
  #allocation0 [shape = 'u32[]', space=smem, size = 0x4, offset = 0x4, fixed_abs, tag = 'smem constant byte address 0x4 - core index']
  #allocation1 [shape = 'u32[144,128]{1,0:T(1,128)}', space=vmem, size = 0x12000, scoped, tag = 'internal scratch']
  %s0 = inlined_call_operand.vmem [shape: f32[1,128,32], index: 0, kind: input, shape index: {}]
  %s1 = inlined_call_operand.hbm [shape: s32[1,128], index: 1, kind: output, shape index: {}]
  %s2 = sld [smem:[#allocation0]]
  $region14: #{tpu_custom_call.1} parent=0
    _
  %s4 = ssub.s32 1, %s2
  %s5 = scalar_select 0, %s4, %s2
  $region1: #{tpu_custom_call.1} parent=0
    #allocation2 [shape = 'u8[512]{0}', space=vmem, size = 0x400, scoped, tag = 'output window, operand 0, single buffered']
    #allocation3 [shape = 's32[1]{0}', space=sflag, size = 0x4, scoped, tag = 'scoped memory for tpu_custom_call.1']
    %6 = vsyncpa [#allocation3], 0
    // Predicated region
    $region2: #{tpu_custom_call.1} parent=1 // pred_check
      _
    $region3: #{tpu_custom_call.1} parent=1 // pred_check_branch
      %8 = sbr.rel (0) target = $region5
    $region4: #{tpu_custom_call.1} parent=1 // pred_region
      _
    $region5: #{tpu_custom_call.1} parent=1 // pred_fallthru
      _
    %v9 = vld [vmem:[%s0] sm:$0xff]
    %v10 = vld [vmem:[%s0 + $0x8] sm:$0xff]
    %v11 = vld [vmem:[%s0 + $0x10] sm:$0xff]
    %v12 = vld [vmem:[%s0 + $0x18] sm:$0xff]
    %v13 = vld [vmem:[%s0 + $0x20] sm:$0xff]
    %v14 = vld [vmem:[%s0 + $0x28] sm:$0xff]
    %v15 = vld [vmem:[%s0 + $0x30] sm:$0xff]
    %v16 = vld [vmem:[%s0 + $0x38] sm:$0xff]
    %v17 = vld [vmem:[%s0 + $0x40] sm:$0xff]
    %v18 = vld [vmem:[%s0 + $0x48] sm:$0xff]
    %v19 = vld [vmem:[%s0 + $0x50] sm:$0xff]
    %v20 = vld [vmem:[%s0 + $0x58] sm:$0xff]
    %v21 = vld [vmem:[%s0 + $0x60] sm:$0xff]
    %v22 = vld [vmem:[%s0 + $0x68] sm:$0xff]
    %v23 = vld [vmem:[%s0 + $0x70] sm:$0xff]
    %v24 = vld [vmem:[%s0 + $0x78] sm:$0xff]
    %vm25 = vcmask 261120
    %v26 = vsel %vm25, %v9, -inf
    %27 = vmax.xlane.f32.xlu0 %v26
    %v28 = vpop.xlane.xlu0 %27
    %v29 = vsel %vm25, %v10, -inf
    %30 = vmax.xlane.f32.xlu0 %v29
    %v31 = vpop.xlane.xlu0 %30
    %v32 = vsel %vm25, %v11, -inf
    %33 = vmax.xlane.f32.xlu0 %v32
    %v34 = vpop.xlane.xlu0 %33
    %v35 = vsel %vm25, %v12, -inf
    %36 = vmax.xlane.f32.xlu0 %v35
    %v37 = vpop.xlane.xlu0 %36
    %v38 = vsel %vm25, %v13, -inf
    %39 = vmax.xlane.f32.xlu0 %v38
    %v40 = vpop.xlane.xlu0 %39
    %v41 = vsel %vm25, %v14, -inf
    %42 = vmax.xlane.f32.xlu0 %v41
    %v43 = vpop.xlane.xlu0 %42
    %v44 = vsel %vm25, %v15, -inf
    %45 = vmax.xlane.f32.xlu0 %v44
    %v46 = vpop.xlane.xlu0 %45
    %v47 = vsel %vm25, %v16, -inf
    %48 = vmax.xlane.f32.xlu0 %v47
    %v49 = vpop.xlane.xlu0 %48
    %v50 = vsel %vm25, %v17, -inf
    %51 = vmax.xlane.f32.xlu0 %v50
    %v52 = vpop.xlane.xlu0 %51
    %v53 = vsel %vm25, %v18, -inf
    %54 = vmax.xlane.f32.xlu0 %v53
    %v55 = vpop.xlane.xlu0 %54
    %v56 = vsel %vm25, %v19, -inf
    %57 = vmax.xlane.f32.xlu0 %v56
    %v58 = vpop.xlane.xlu0 %57
    %v59 = vsel %vm25, %v20, -inf
    %60 = vmax.xlane.f32.xlu0 %v59
    %v61 = vpop.xlane.xlu0 %60
    %v62 = vsel %vm25, %v21, -inf
    %63 = vmax.xlane.f32.xlu0 %v62
    %v64 = vpop.xlane.xlu0 %63
    %v65 = vsel %vm25, %v22, -inf
    %66 = vmax.xlane.f32.xlu0 %v65
    %v67 = vpop.xlane.xlu0 %66
    %v68 = vsel %vm25, %v23, -inf
    %69 = vmax.xlane.f32.xlu0 %v68
    %v70 = vpop.xlane.xlu0 %69
    %v71 = vsel %vm25, %v24, -inf
    %72 = vmax.xlane.f32.xlu0 %v71
    %v73 = vpop.xlane.xlu0 %72
    %v74 = vlaneseq
    %v75 = vand.u32 %v74, 127
    %vm76 = vcmp.eq.f32.partialorder %v9, %v28
    %vm77 = vcmp.eq.f32.partialorder %v10, %v31
    %vm78 = vcmp.eq.f32.partialorder %v11, %v34
    %vm79 = vcmp.eq.f32.partialorder %v12, %v37
    %vm80 = vcmp.eq.f32.partialorder %v13, %v40
    %vm81 = vcmp.eq.f32.partialorder %v14, %v43
    %vm82 = vcmp.eq.f32.partialorder %v15, %v46
    %vm83 = vcmp.eq.f32.partialorder %v16, %v49
    %vm84 = vcmp.eq.f32.partialorder %v17, %v52
    %vm85 = vcmp.eq.f32.partialorder %v18, %v55
    %vm86 = vcmp.eq.f32.partialorder %v19, %v58
    %vm87 = vcmp.eq.f32.partialorder %v20, %v61
    %vm88 = vcmp.eq.f32.partialorder %v21, %v64
    %vm89 = vcmp.eq.f32.partialorder %v22, %v67
    %vm90 = vcmp.eq.f32.partialorder %v23, %v70
    %vm91 = vcmp.eq.f32.partialorder %v24, %v73
    %v92 = vsel %vm76, %v75, 32
    %v93 = vsel %vm77, %v75, 32
    %v94 = vsel %vm78, %v75, 32
    %v95 = vsel %vm79, %v75, 32
    %v96 = vsel %vm80, %v75, 32
    %v97 = vsel %vm81, %v75, 32
    %v98 = vsel %vm82, %v75, 32
    %v99 = vsel %vm83, %v75, 32
    %v100 = vsel %vm84, %v75, 32
    %v101 = vsel %vm85, %v75, 32
    %v102 = vsel %vm86, %v75, 32
    %v103 = vsel %vm87, %v75, 32
    %v104 = vsel %vm88, %v75, 32
    %v105 = vsel %vm89, %v75, 32
    %v106 = vsel %vm90, %v75, 32
    %v107 = vsel %vm91, %v75, 32
    %v108 = vsel %vm25, %v92, 2147483647
    %v109 = vand.u32 %v108, 65535
    %v110 = vshra.s32 %v108, 16
    %v111 = vcvt.s32.f32 %v109
    %v112 = vcvt.s32.f32 %v110
    %113 = vmin.xlane.f32.xlu0 %v112
    %v114 = vpop.xlane.xlu0 %113
    %vm115 = vcmp.eq.f32.partialorder %v112, %v114
    %v116 = vsel %vm115, %v111, inf
    %117 = vmin.xlane.f32.xlu0 %v116
    %v118 = vpop.xlane.xlu0 %117
    %v119 = vcvt.f32.s32 %v118
    %v120 = vcvt.f32.s32 %v114
    %v121 = vshll.u32 %v120, 16
    %v122 = vadd.s32 %v121, %v119
    %v123 = vsel %vm25, %v93, 2147483647
    %v124 = vand.u32 %v123, 65535
    %v125 = vshra.s32 %v123, 16
    %v126 = vcvt.s32.f32 %v124
    %v127 = vcvt.s32.f32 %v125
    %128 = vmin.xlane.f32.xlu0 %v127
    %v129 = vpop.xlane.xlu0 %128
    %vm130 = vcmp.eq.f32.partialorder %v127, %v129
    %v131 = vsel %vm130, %v126, inf
    %132 = vmin.xlane.f32.xlu0 %v131
    %v133 = vpop.xlane.xlu0 %132
    %v134 = vcvt.f32.s32 %v133
    %v135 = vcvt.f32.s32 %v129
    %v136 = vshll.u32 %v135, 16
    %v137 = vadd.s32 %v136, %v134
    %v138 = vsel %vm25, %v94, 2147483647
    %v139 = vand.u32 %v138, 65535
    %v140 = vshra.s32 %v138, 16
    %v141 = vcvt.s32.f32 %v139
    %v142 = vcvt.s32.f32 %v140
    %143 = vmin.xlane.f32.xlu0 %v142
    %v144 = vpop.xlane.xlu0 %143
    %vm145 = vcmp.eq.f32.partialorder %v142, %v144
    %v146 = vsel %vm145, %v141, inf
    %147 = vmin.xlane.f32.xlu0 %v146
    %v148 = vpop.xlane.xlu0 %147
    %v149 = vcvt.f32.s32 %v148
    %v150 = vcvt.f32.s32 %v144
    %v151 = vshll.u32 %v150, 16
    %v152 = vadd.s32 %v151, %v149
    %v153 = vsel %vm25, %v95, 2147483647
    %v154 = vand.u32 %v153, 65535
    %v155 = vshra.s32 %v153, 16
    %v156 = vcvt.s32.f32 %v154
    %v157 = vcvt.s32.f32 %v155
    %158 = vmin.xlane.f32.xlu0 %v157
    %v159 = vpop.xlane.xlu0 %158
    %vm160 = vcmp.eq.f32.partialorder %v157, %v159
    %v161 = vsel %vm160, %v156, inf
    %162 = vmin.xlane.f32.xlu0 %v161
    %v163 = vpop.xlane.xlu0 %162
    %v164 = vcvt.f32.s32 %v163
    %v165 = vcvt.f32.s32 %v159
    %v166 = vshll.u32 %v165, 16
    %v167 = vadd.s32 %v166, %v164
    %v168 = vsel %vm25, %v96, 2147483647
    %v169 = vand.u32 %v168, 65535
    %v170 = vshra.s32 %v168, 16
    %v171 = vcvt.s32.f32 %v169
    %v172 = vcvt.s32.f32 %v170
    %173 = vmin.xlane.f32.xlu0 %v172
    %v174 = vpop.xlane.xlu0 %173
    %vm175 = vcmp.eq.f32.partialorder %v172, %v174
    %v176 = vsel %vm175, %v171, inf
    %177 = vmin.xlane.f32.xlu0 %v176
    %v178 = vpop.xlane.xlu0 %177
    %v179 = vcvt.f32.s32 %v178
    %v180 = vcvt.f32.s32 %v174
    %v181 = vshll.u32 %v180, 16
    %v182 = vadd.s32 %v181, %v179
    %v183 = vsel %vm25, %v97, 2147483647
    %v184 = vand.u32 %v183, 65535
    %v185 = vshra.s32 %v183, 16
    %v186 = vcvt.s32.f32 %v184
    %v187 = vcvt.s32.f32 %v185
    %188 = vmin.xlane.f32.xlu0 %v187
    %v189 = vpop.xlane.xlu0 %188
    %vm190 = vcmp.eq.f32.partialorder %v187, %v189
    %v191 = vsel %vm190, %v186, inf
    %192 = vmin.xlane.f32.xlu0 %v191
    %v193 = vpop.xlane.xlu0 %192
    %v194 = vcvt.f32.s32 %v193
    %v195 = vcvt.f32.s32 %v189
    %v196 = vshll.u32 %v195, 16
    %v197 = vadd.s32 %v196, %v194
    %v198 = vsel %vm25, %v98, 2147483647
    %v199 = vand.u32 %v198, 65535
    %v200 = vshra.s32 %v198, 16
    %v201 = vcvt.s32.f32 %v199
    %v202 = vcvt.s32.f32 %v200
    %203 = vmin.xlane.f32.xlu0 %v202
    %v204 = vpop.xlane.xlu0 %203
    %vm205 = vcmp.eq.f32.partialorder %v202, %v204
    %v206 = vsel %vm205, %v201, inf
    %207 = vmin.xlane.f32.xlu0 %v206
    %v208 = vpop.xlane.xlu0 %207
    %v209 = vcvt.f32.s32 %v208
    %v210 = vcvt.f32.s32 %v204
    %v211 = vshll.u32 %v210, 16
    %v212 = vadd.s32 %v211, %v209
    %v213 = vsel %vm25, %v99, 2147483647
    %v214 = vand.u32 %v213, 65535
    %v215 = vshra.s32 %v213, 16
    %v216 = vcvt.s32.f32 %v214
    %v217 = vcvt.s32.f32 %v215
    %218 = vmin.xlane.f32.xlu0 %v217
    %v219 = vpop.xlane.xlu0 %218
    %vm220 = vcmp.eq.f32.partialorder %v217, %v219
    %v221 = vsel %vm220, %v216, inf
    %222 = vmin.xlane.f32.xlu0 %v221
    %v223 = vpop.xlane.xlu0 %222
    %v224 = vcvt.f32.s32 %v223
    %v225 = vcvt.f32.s32 %v219
    %v226 = vshll.u32 %v225, 16
    %v227 = vadd.s32 %v226, %v224
    %v228 = vsel %vm25, %v100, 2147483647
    %v229 = vand.u32 %v228, 65535
    %v230 = vshra.s32 %v228, 16
    %v231 = vcvt.s32.f32 %v229
    %v232 = vcvt.s32.f32 %v230
    %233 = vmin.xlane.f32.xlu0 %v232
    %v234 = vpop.xlane.xlu0 %233
    %vm235 = vcmp.eq.f32.partialorder %v232, %v234
    %v236 = vsel %vm235, %v231, inf
    %237 = vmin.xlane.f32.xlu0 %v236
    %v238 = vpop.xlane.xlu0 %237
    %v239 = vcvt.f32.s32 %v238
    %v240 = vcvt.f32.s32 %v234
    %v241 = vshll.u32 %v240, 16
    %v242 = vadd.s32 %v241, %v239
    %v243 = vsel %vm25, %v101, 2147483647
    %v244 = vand.u32 %v243, 65535
    %v245 = vshra.s32 %v243, 16
    %v246 = vcvt.s32.f32 %v244
    %v247 = vcvt.s32.f32 %v245
    %248 = vmin.xlane.f32.xlu0 %v247
    %v249 = vpop.xlane.xlu0 %248
    %vm250 = vcmp.eq.f32.partialorder %v247, %v249
    %v251 = vsel %vm250, %v246, inf
    %252 = vmin.xlane.f32.xlu0 %v251
    %v253 = vpop.xlane.xlu0 %252
    %v254 = vcvt.f32.s32 %v253
    %v255 = vcvt.f32.s32 %v249
    %v256 = vshll.u32 %v255, 16
    %v257 = vadd.s32 %v256, %v254
    %v258 = vsel %vm25, %v102, 2147483647
    %v259 = vand.u32 %v258, 65535
    %v260 = vshra.s32 %v258, 16
    %v261 = vcvt.s32.f32 %v259
    %v262 = vcvt.s32.f32 %v260
    %263 = vmin.xlane.f32.xlu0 %v262
    %v264 = vpop.xlane.xlu0 %263
    %vm265 = vcmp.eq.f32.partialorder %v262, %v264
    %v266 = vsel %vm265, %v261, inf
    %267 = vmin.xlane.f32.xlu0 %v266
    %v268 = vpop.xlane.xlu0 %267
    %v269 = vcvt.f32.s32 %v268
    %v270 = vcvt.f32.s32 %v264
    %v271 = vshll.u32 %v270, 16
    %v272 = vadd.s32 %v271, %v269
    %v273 = vsel %vm25, %v103, 2147483647
    %v274 = vand.u32 %v273, 65535
    %v275 = vshra.s32 %v273, 16
    %v276 = vcvt.s32.f32 %v274
    %v277 = vcvt.s32.f32 %v275
    %278 = vmin.xlane.f32.xlu0 %v277
    %v279 = vpop.xlane.xlu0 %278
    %vm280 = vcmp.eq.f32.partialorder %v277, %v279
    %v281 = vsel %vm280, %v276, inf
    %282 = vmin.xlane.f32.xlu0 %v281
    %v283 = vpop.xlane.xlu0 %282
    %v284 = vcvt.f32.s32 %v283
    %v285 = vcvt.f32.s32 %v279
    %v286 = vshll.u32 %v285, 16
    %v287 = vadd.s32 %v286, %v284
    %v288 = vsel %vm25, %v104, 2147483647
    %v289 = vand.u32 %v288, 65535
    %v290 = vshra.s32 %v288, 16
    %v291 = vcvt.s32.f32 %v289
    %v292 = vcvt.s32.f32 %v290
    %293 = vmin.xlane.f32.xlu0 %v292
    %v294 = vpop.xlane.xlu0 %293
    %vm295 = vcmp.eq.f32.partialorder %v292, %v294
    %v296 = vsel %vm295, %v291, inf
    %297 = vmin.xlane.f32.xlu0 %v296
    %v298 = vpop.xlane.xlu0 %297
    %v299 = vcvt.f32.s32 %v298
    %v300 = vcvt.f32.s32 %v294
    %v301 = vshll.u32 %v300, 16
    %v302 = vadd.s32 %v301, %v299
    %v303 = vsel %vm25, %v105, 2147483647
    %v304 = vand.u32 %v303, 65535
    %v305 = vshra.s32 %v303, 16
    %v306 = vcvt.s32.f32 %v304
    %v307 = vcvt.s32.f32 %v305
    %308 = vmin.xlane.f32.xlu0 %v307
    %v309 = vpop.xlane.xlu0 %308
    %vm310 = vcmp.eq.f32.partialorder %v307, %v309
    %v311 = vsel %vm310, %v306, inf
    %312 = vmin.xlane.f32.xlu0 %v311
    %v313 = vpop.xlane.xlu0 %312
    %v314 = vcvt.f32.s32 %v313
    %v315 = vcvt.f32.s32 %v309
    %v316 = vshll.u32 %v315, 16
    %v317 = vadd.s32 %v316, %v314
    %v318 = vsel %vm25, %v106, 2147483647
    %v319 = vand.u32 %v318, 65535
    %v320 = vshra.s32 %v318, 16
    %v321 = vcvt.s32.f32 %v319
    %v322 = vcvt.s32.f32 %v320
    %323 = vmin.xlane.f32.xlu0 %v322
    %v324 = vpop.xlane.xlu0 %323
    %vm325 = vcmp.eq.f32.partialorder %v322, %v324
    %v326 = vsel %vm325, %v321, inf
    %327 = vmin.xlane.f32.xlu0 %v326
    %v328 = vpop.xlane.xlu0 %327
    %v329 = vcvt.f32.s32 %v328
    %v330 = vcvt.f32.s32 %v324
    %v331 = vshll.u32 %v330, 16
    %v332 = vadd.s32 %v331, %v329
    %v333 = vsel %vm25, %v107, 2147483647
    %v334 = vand.u32 %v333, 65535
    %v335 = vshra.s32 %v333, 16
    %v336 = vcvt.s32.f32 %v334
    %v337 = vcvt.s32.f32 %v335
    %338 = vmin.xlane.f32.xlu0 %v337
    %v339 = vpop.xlane.xlu0 %338
    %vm340 = vcmp.eq.f32.partialorder %v337, %v339
    %v341 = vsel %vm340, %v336, inf
    %342 = vmin.xlane.f32.xlu0 %v341
    %v343 = vpop.xlane.xlu0 %342
    %v344 = vcvt.f32.s32 %v343
    %v345 = vcvt.f32.s32 %v339
    %v346 = vshll.u32 %v345, 16
    %v347 = vadd.s32 %v346, %v344
    %v348 = vlaneseq
    %v349 = vshrl.u32 %v348, 7
    %v350 = vsub.s32 %v75, %v349
    %v351 = vrot.slane %v122, %v350
    %v352 = vadd.s32 %v75, 4294967288
    %v353 = vlaneseq
    %v354 = vshrl.u32 %v353, 7
    %v355 = vsub.s32 %v352, %v354
    %v356 = vrot.slane %v137, %v355
    %vm357 = vcmask 130112
    %v358 = vsel %vm357, %v356, %v351
    %v359 = vadd.s32 %v75, 4294967280
    %v360 = vlaneseq
    %v361 = vshrl.u32 %v360, 7
    %v362 = vsub.s32 %v359, %v361
    %v363 = vrot.slane %v152, %v362
    %vm364 = vcmask 195712
    %v365 = vsel %vm364, %v363, %v358
    %v366 = vadd.s32 %v75, 4294967272
    %v367 = vlaneseq
    %v368 = vshrl.u32 %v367, 7
    %v369 = vsub.s32 %v366, %v368
    %v370 = vrot.slane %v167, %v369
    %vm371 = vcmask 261312
    %v372 = vsel %vm371, %v370, %v365
    %v373 = vadd.s32 %v75, 4294967264
    %v374 = vlaneseq
    %v375 = vshrl.u32 %v374, 7
    %v376 = vsub.s32 %v373, %v375
    %v377 = vrot.slane %v182, %v376
    %vm378 = vcmask 326912
    %v379 = vsel %vm378, %v377, %v372
    %v380 = vadd.s32 %v75, 4294967256
    %v381 = vlaneseq
    %v382 = vshrl.u32 %v381, 7
    %v383 = vsub.s32 %v380, %v382
    %v384 = vrot.slane %v197, %v383
    %vm385 = vcmask 392512
    %v386 = vsel %vm385, %v384, %v379
    %v387 = vadd.s32 %v75, 4294967248
    %v388 = vlaneseq
    %v389 = vshrl.u32 %v388, 7
    %v390 = vsub.s32 %v387, %v389
    %v391 = vrot.slane %v212, %v390
    %vm392 = vcmask 458112
    %v393 = vsel %vm392, %v391, %v386
    %v394 = vadd.s32 %v75, 4294967240
    %v395 = vlaneseq
    %v396 = vshrl.u32 %v395, 7
    %v397 = vsub.s32 %v394, %v396
    %v398 = vrot.slane %v227, %v397
    %vm399 = vcmask 523712
    %v400 = vsel %vm399, %v398, %v393
    %v401 = vadd.s32 %v75, 4294967232
    %v402 = vlaneseq
    %v403 = vshrl.u32 %v402, 7
    %v404 = vsub.s32 %v401, %v403
    %v405 = vrot.slane %v242, %v404
    %vm406 = vcmask 589312
    %v407 = vsel %vm406, %v405, %v400
    %v408 = vadd.s32 %v75, 4294967224
    %v409 = vlaneseq
    %v410 = vshrl.u32 %v409, 7
    %v411 = vsub.s32 %v408, %v410
    %v412 = vrot.slane %v257, %v411
    %vm413 = vcmask 654912
    %v414 = vsel %vm413, %v412, %v407
    %v415 = vadd.s32 %v75, 4294967216
    %v416 = vlaneseq
    %v417 = vshrl.u32 %v416, 7
    %v418 = vsub.s32 %v415, %v417
    %v419 = vrot.slane %v272, %v418
    %vm420 = vcmask 720512
    %v421 = vsel %vm420, %v419, %v414
    %v422 = vadd.s32 %v75, 4294967208
    %v423 = vlaneseq
    %v424 = vshrl.u32 %v423, 7
    %v425 = vsub.s32 %v422, %v424
    %v426 = vrot.slane %v287, %v425
    %vm427 = vcmask 786112
    %v428 = vsel %vm427, %v426, %v421
    %v429 = vadd.s32 %v75, 4294967200
    %v430 = vlaneseq
    %v431 = vshrl.u32 %v430, 7
    %v432 = vsub.s32 %v429, %v431
    %v433 = vrot.slane %v302, %v432
    %vm434 = vcmask 851712
    %v435 = vsel %vm434, %v433, %v428
    %v436 = vadd.s32 %v75, 4294967192
    %v437 = vlaneseq
    %v438 = vshrl.u32 %v437, 7
    %v439 = vsub.s32 %v436, %v438
    %v440 = vrot.slane %v317, %v439
    %vm441 = vcmask 917312
    %v442 = vsel %vm441, %v440, %v435
    %v443 = vadd.s32 %v75, 4294967184
    %v444 = vlaneseq
    %v445 = vshrl.u32 %v444, 7
    %v446 = vsub.s32 %v443, %v445
    %v447 = vrot.slane %v332, %v446
    %vm448 = vcmask 982912
    %v449 = vsel %vm448, %v447, %v442
    %v450 = vadd.s32 %v75, 4294967176
    %v451 = vlaneseq
    %v452 = vshrl.u32 %v451, 7
    %v453 = vsub.s32 %v450, %v452
    %v454 = vrot.slane %v347, %v453
    %vm455 = vcmask 1048512
    %v456 = vsel %vm455, %v454, %v449
    %457 = vst [vmem:[#allocation2] sm:$0x1] %v456
    // Predicated region
    $region6: #{tpu_custom_call.1} parent=1 // pred_check
      _
    $region7: #{tpu_custom_call.1} parent=1 // pred_check_branch
      %459 = sbr.rel (0) target = $region9
    $region8: #{tpu_custom_call.1} parent=1 // pred_region
      %s461 = ssub.s32 16, 16
      %462 = vsyncadd [#allocation3], %s461
      %s464 = sshll.u32 [#allocation2], 4
      %s465 = int_to_ptr.vmem [resolvable:$true] %s464
      %467 = dma.vmem_to_hbm [thread:$0]  %s465, 16, %s1, [#allocation3]
    $region9: #{tpu_custom_call.1} parent=1 // pred_fallthru
      _
    // Predicated region
    $region10: #{tpu_custom_call.1} parent=1 // pred_check
      _
    $region11: #{tpu_custom_call.1} parent=1 // pred_check_branch
      %469 = sbr.rel (0) target = $region13
    $region12: #{tpu_custom_call.1} parent=1 // pred_region
      %470 = dma.done [#allocation3], 16
    $region13: #{tpu_custom_call.1} parent=1 // pred_fallthru
      _
    %471 = vsyncpa [#allocation3], 1

</llo_original>
